<compile_context>
chip_gen: v7x
topology: tpu7x:2x2x1
jax: 0.10.0
libtpu: 0.0.40
codegen_flags: <defaults>
</compile_context>

<pallas_src>
import functools
import math

import jax
import jax.numpy as jnp
from jax import lax
from jax.experimental import pallas as pl
from jax.experimental.pallas import tpu as pltpu

_NEG_BIG = -1e30  # "minus infinity" for masked (target / padded) class columns


def _round_up(v, mult):
    return ((v + mult - 1) // mult) * mult


def _angular_sm_kernel(x_ref, w_ref, lbl_ref, out_ref,
                       xs_ref, m_sc, l_sc, stc_sc, *,
                       loss_type, s, m, eps, n_real, c_real,
                       mask_rows, mask_cols):
    i = pl.program_id(0)          # batch-block index ("parallel")
    j = pl.program_id(1)          # class-tile index   ("arbitrary", reduction)
    nj = pl.num_programs(1)
    bn, dp = x_ref.shape
    tc = w_ref.shape[0]

    s_f = jnp.float32(s)

    # ---- per-batch-block init (first class tile only) ----
    @pl.when(j == 0)
    def _init():
        x = x_ref[...].astype(jnp.float32)
        sq = jnp.sum(x * x, axis=-1, keepdims=True)
        inv_norm = jax.lax.rsqrt(jnp.maximum(sq, 1e-12))
        # Fold s into the normalized rows so the matmul directly yields s*wf.
        xs_ref[...] = (x * (s_f * inv_norm)).astype(jnp.bfloat16)
        m_sc[...] = jnp.full((bn, 1), _NEG_BIG, jnp.float32)
        l_sc[...] = jnp.zeros((bn, 1), jnp.float32)
        stc_sc[...] = jnp.zeros((bn, 1), jnp.float32)

    # ---- bf16 MXU matmul on this class tile: swf = s * wf[:, tile]  (bn, tc) ----
    # Contraction over the feature dim of both operands (no HBM transpose of W).
    swf = lax.dot_general(xs_ref[...], w_ref[...],
                          (((1,), (1,)), ((), ())),
                          preferred_element_type=jnp.float32)

    lbl = lbl_ref[...]                                             # (bn, 1) int32
    col = j * tc + jax.lax.broadcasted_iota(jnp.int32, (bn, tc), 1)
    onehot = col == lbl

    # Accumulate the target value s*wf[i, y_i]; each row's target lies in
    # exactly one class tile, all other tiles contribute zero.
    stc_sc[...] += jnp.sum(jnp.where(onehot, swf, 0.0), axis=-1, keepdims=True)

    # Online log-sum-exp over NON-target (and non-padded) columns.
    if mask_cols:
        kill = onehot | (col >= c_real)
    else:
        kill = onehot
    z = jnp.where(kill, jnp.float32(_NEG_BIG), swf)
    m_prev = m_sc[...]
    m_new = jnp.maximum(m_prev, jnp.max(z, axis=-1, keepdims=True))
    l_sc[...] = (l_sc[...] * jnp.exp(m_prev - m_new)
                 + jnp.sum(jnp.exp(z - m_new), axis=-1, keepdims=True))
    m_sc[...] = m_new

    # ---- finalize after the last class tile ----
    @pl.when(j == nj - 1)
    def _fin():
        stc = stc_sc[...]                                   # s * wf[i, y_i]
        if loss_type == "arcface":
            t = jnp.clip(stc * jnp.float32(1.0 / s), -1.0 + eps, 1.0 - eps)
            # cos(acos(t) + m) = t*cos(m) - sqrt(1 - t^2)*sin(m)   (no acos on TPU)
            num = s_f * (t * jnp.float32(math.cos(m))
                         - jnp.sqrt(jnp.maximum(1.0 - t * t, 0.0))
                         * jnp.float32(math.sin(m)))
        elif loss_type == "cosface":
            num = stc - jnp.float32(s * m)
        else:
            raise NotImplementedError(loss_type)

        # denominator = exp(num) + sum_{c != y} exp(s*wf_c), folded in stably.
        mn = jnp.maximum(m_sc[...], num)
        l = l_sc[...] * jnp.exp(m_sc[...] - mn) + jnp.exp(num - mn)
        logden = mn + jnp.log(l)
        per_row = num - logden                               # (bn, 1)
        if mask_rows:
            row = i * bn + jax.lax.broadcasted_iota(jnp.int32, (bn, 1), 0)
            per_row = jnp.where(row < n_real, per_row, 0.0)
        psum = jnp.sum(per_row, axis=(0, 1), keepdims=True)  # (1, 1)
        # Lane-dense unmasked store of this block's partial sum.
        out_ref[...] = jnp.broadcast_to(psum, (8, 128))


def _angular_penalty_reference(x, weight, labels, loss_type, s, m, eps):
    """Literal plain-JAX port of the PyTorch forward (validation / sphereface)."""
    xn = x / jnp.linalg.norm(x, axis=1, keepdims=True)
    wf = xn @ weight.T
    n, c = wf.shape
    tc = wf[jnp.arange(n), labels]
    t = jnp.clip(tc, -1.0 + eps, 1.0 - eps)
    if loss_type == "cosface":
        num = s * (tc - m)
    elif loss_type == "arcface":
        num = s * jnp.cos(jnp.arccos(t) + m)
    else:  # sphereface
        num = s * jnp.cos(m * jnp.arccos(t))
    mask = labels[:, None] == jnp.arange(c)[None, :]
    den = jnp.exp(num) + jnp.sum(jnp.where(mask, 0.0, jnp.exp(s * wf)), axis=1)
    return -jnp.mean(num - jnp.log(den))


def angular_penalty_sm_loss(x, weight, labels, *, loss_type="arcface",
                            s=None, m=None, eps=1e-7,
                            block_n=256, block_c=512):
    """x: (N, D), weight: (C, D), labels: (N,) int -> scalar loss."""
    loss_type = loss_type.lower()
    assert loss_type in ("arcface", "sphereface", "cosface")
    if loss_type == "arcface":
        s = 64.0 if s is None else s
        m = 0.5 if m is None else m
    elif loss_type == "sphereface":
        s = 64.0 if s is None else s
        m = 1.35 if m is None else m
    else:  # cosface
        s = 30.0 if s is None else s
        m = 0.4 if m is None else m

    if loss_type == "sphereface":
        # TODO(synk): cos(m*acos(.)) with non-integer m has no clean Pallas/TPU
        # lowering; rarely-used variant handled by the plain-JAX path.
        return _angular_penalty_reference(x, weight, labels, loss_type, s, m, eps)

    N, D = x.shape
    C, D2 = weight.shape
    assert D == D2

    # Batch tile: sublane-dense, capped so >= 2 blocks exist when possible
    # (both v7x TensorCores get work on the "parallel" batch axis).
    bn = max(8, min(block_n, _round_up(-(-N // 2), 8)))
    np_ = _round_up(N, bn)
    nblk = np_ // bn

    # Contraction dim: lane-dense; 256-aligned for the 2x256 MXU when non-tiny.
    dp = _round_up(D, 128) if D <= 128 else _round_up(D, 256)

    # Class tile: lane-dense, streamed on the reduction grid axis so VMEM usage
    # is independent of the number of classes.
    cp0 = _round_up(C, 128)
    tc = min(block_c, cp0)
    cp = _round_up(C, tc)
    ncblk = cp // tc

    # Padded operands.  W stays (C, D)-shaped (no transpose) and is cast to bf16
    # once; padding is skipped entirely when shapes are already aligned.
    x_p = x if (N, D) == (np_, dp) else (
        jnp.zeros((np_, dp), x.dtype).at[:N, :D].set(x))
    w_bf = weight.astype(jnp.bfloat16)
    w_p = w_bf if (C, D) == (cp, dp) else (
        jnp.zeros((cp, dp), jnp.bfloat16).at[:C, :D].set(w_bf))
    lbl_p = jnp.zeros((np_, 1), jnp.int32).at[:N, 0].set(labels.astype(jnp.int32))

    kernel = functools.partial(
        _angular_sm_kernel, loss_type=loss_type, s=float(s), m=float(m),
        eps=float(eps), n_real=N, c_real=C,
        mask_rows=(np_ != N), mask_cols=(cp != C))

    partials = pl.pallas_call(
        kernel,
        out_shape=jax.ShapeDtypeStruct((8 * nblk, 128), jnp.float32),
        grid_spec=pltpu.PrefetchScalarGridSpec(
            num_scalar_prefetch=0,
            grid=(nblk, ncblk),
            in_specs=[
                pl.BlockSpec((bn, dp), lambda i, j: (i, 0)),   # activations
                pl.BlockSpec((tc, dp), lambda i, j: (j, 0)),   # streamed weight tile
                pl.BlockSpec((bn, 1), lambda i, j: (i, 0)),    # labels
            ],
            out_specs=pl.BlockSpec((8, 128), lambda i, j: (i, 0)),
            scratch_shapes=[
                pltpu.VMEM((bn, dp), jnp.bfloat16),   # s * normalize(x)  (MXU lhs)
                pltpu.VMEM((bn, 1), jnp.float32),     # running max
                pltpu.VMEM((bn, 1), jnp.float32),     # running sum of exp
                pltpu.VMEM((bn, 1), jnp.float32),     # target s*wf accumulator
            ]),
        compiler_params=pltpu.CompilerParams(
            dimension_semantics=("parallel", "arbitrary"),
            vmem_limit_bytes=48 * 1024 * 1024),
    )(x_p, w_p, lbl_p)

    # Each (8,128) tile holds that batch block's partial sum broadcast; pick one.
    return -jnp.sum(partials[0::8, 0]) / N


if __name__ == "__main__":
    # Small shapes consistent with the module: batch=8, feat_dim=32, classes=10.
    N, D, C = 8, 32, 10
    key = jax.random.PRNGKey(0)
    kx, kw, kl = jax.random.split(key, 3)
    x = jax.random.normal(kx, (N, D), dtype=jnp.float32)
    # Modest weight scale keeps the reference's un-stabilized exp(s*wf) finite in f32.
    w = 0.05 * jax.random.normal(kw, (C, D), dtype=jnp.float32)
    labels = jax.random.randint(kl, (N,), 0, C, dtype=jnp.int32)

    for lt in ("arcface", "cosface"):
        loss = angular_penalty_sm_loss(x, w, labels, loss_type=lt)
        loss = jax.block_until_ready(loss)
        ref = _angular_penalty_reference(
            x, w, labels, lt,
            s=64.0 if lt == "arcface" else 30.0,
            m=0.5 if lt == "arcface" else 0.4,
            eps=1e-7)
        ref = jax.block_until_ready(ref)
        # Kernel feeds the MXU in bf16 (per perf guidance), so compare against
        # the f32 reference with a tolerance appropriate for bf16 inputs.
        rel = abs(float(loss) - float(ref)) / max(1.0, abs(float(ref)))
        assert rel < 1e-2, (lt, float(loss), float(ref), rel)
    print("KERNEL_OK")
</pallas_src>

<mosaic_0001>
module attributes {stable_mosaic.version = 11 : i64} {
  func.func @_angular_sm_kernel(%arg0: i32, %arg1: i32, %arg2: memref<8x128xf32, #tpu.memory_space<vmem>>, %arg3: memref<128x128xbf16, #tpu.memory_space<vmem>>, %arg4: memref<8x1xi32, #tpu.memory_space<vmem>>, %arg5: memref<8x128xf32, #tpu.memory_space<vmem>>, %arg6: memref<8x128xbf16, #tpu.memory_space<vmem>>, %arg7: memref<8x1xf32, #tpu.memory_space<vmem>>, %arg8: memref<8x1xf32, #tpu.memory_space<vmem>>, %arg9: memref<8x1xf32, #tpu.memory_space<vmem>>) attributes {dimension_semantics = [#tpu.dimension_semantics<parallel>, #tpu.dimension_semantics<arbitrary>], iteration_bounds = array<i64: 1, 1>, scalar_prefetch = 0 : i64, scratch_operands = 4 : i64, tpu.core_type = #tpu.core_type<tc>, window_params = [{transform_indices = @transform_0, window_bounds = array<i64: 8, 128>}, {transform_indices = @transform_1, window_bounds = array<i64: 128, 128>}, {transform_indices = @transform_2, window_bounds = array<i64: 8, 1>}, {transform_indices = @transform_3, window_bounds = array<i64: 8, 128>}]} {
    %c0_i32 = arith.constant 0 : i32
    %0 = arith.cmpi eq, %arg1, %c0_i32 : i32
    %1 = arith.extui %0 : i1 to i32
    %cst = arith.constant 6.400000e+01 : f32
    %c0_i32_0 = arith.constant 0 : i32
    %2 = arith.cmpi ne, %1, %c0_i32_0 : i32
    scf.if %2 {
      %c0_27 = arith.constant 0 : index
      %c0_28 = arith.constant 0 : index
      %44 = vector.load %arg2[%c0_27, %c0_28] : memref<8x128xf32, #tpu.memory_space<vmem>>, vector<8x128xf32>
      %45 = arith.mulf %44, %44 : vector<8x128xf32>
      %cst_29 = arith.constant dense<0.000000e+00> : vector<8xf32>
      %46 = vector.multi_reduction <add>, %45, %cst_29 [1] : vector<8x128xf32> to vector<8xf32>
      %47 = vector.shape_cast %46 : vector<8xf32> to vector<8x1xf32>
      %cst_30 = arith.constant 9.99999996E-13 : f32
      %48 = vector.broadcast %cst_30 : f32 to vector<8x1xf32>
      %49 = arith.maximumf %47, %48 : vector<8x1xf32>
      %50 = math.rsqrt %49 : vector<8x1xf32>
      %51 = vector.broadcast %cst : f32 to vector<8x1xf32>
      %52 = arith.mulf %51, %50 : vector<8x1xf32>
      %53 = vector.broadcast %52 : vector<8x1xf32> to vector<8x128xf32>
      %54 = arith.mulf %44, %53 : vector<8x128xf32>
      %55 = arith.truncf %54 : vector<8x128xf32> to vector<8x128xbf16>
      %c0_31 = arith.constant 0 : index
      %c0_32 = arith.constant 0 : index
      %56 = vector.load %arg6[%c0_31, %c0_32] : memref<8x128xbf16, #tpu.memory_space<vmem>>, vector<8x128xbf16>
      tpu.vector_store %arg6[%c0_31, %c0_32], %55 {strides = array<i32>} : memref<8x128xbf16, #tpu.memory_space<vmem>>, vector<8x128xbf16>,
      %cst_33 = arith.constant -1.000000e+30 : f32
      %57 = vector.broadcast %cst_33 : f32 to vector<8x1xf32>
      %c0_34 = arith.constant 0 : index
      %c0_35 = arith.constant 0 : index
      %58 = vector.load %arg7[%c0_34, %c0_35] : memref<8x1xf32, #tpu.memory_space<vmem>>, vector<8x1xf32>
      tpu.vector_store %arg7[%c0_34, %c0_35], %57 {strides = array<i32>} : memref<8x1xf32, #tpu.memory_space<vmem>>, vector<8x1xf32>,
      %cst_36 = arith.constant 0.000000e+00 : f32
      %59 = vector.broadcast %cst_36 : f32 to vector<8x1xf32>
      %c0_37 = arith.constant 0 : index
      %c0_38 = arith.constant 0 : index
      %60 = vector.load %arg8[%c0_37, %c0_38] : memref<8x1xf32, #tpu.memory_space<vmem>>, vector<8x1xf32>
      tpu.vector_store %arg8[%c0_37, %c0_38], %59 {strides = array<i32>} : memref<8x1xf32, #tpu.memory_space<vmem>>, vector<8x1xf32>,
      %cst_39 = arith.constant 0.000000e+00 : f32
      %61 = vector.broadcast %cst_39 : f32 to vector<8x1xf32>
      %c0_40 = arith.constant 0 : index
      %c0_41 = arith.constant 0 : index
      %62 = vector.load %arg9[%c0_40, %c0_41] : memref<8x1xf32, #tpu.memory_space<vmem>>, vector<8x1xf32>
      tpu.vector_store %arg9[%c0_40, %c0_41], %61 {strides = array<i32>} : memref<8x1xf32, #tpu.memory_space<vmem>>, vector<8x1xf32>,
    } else {
    }
    %c0 = arith.constant 0 : index
    %c0_1 = arith.constant 0 : index
    %3 = vector.load %arg6[%c0, %c0_1] : memref<8x128xbf16, #tpu.memory_space<vmem>>, vector<8x128xbf16>
    %c0_2 = arith.constant 0 : index
    %c0_3 = arith.constant 0 : index
    %4 = vector.load %arg3[%c0_2, %c0_3] : memref<128x128xbf16, #tpu.memory_space<vmem>>, vector<128x128xbf16>
    %cst_4 = arith.constant dense<0.000000e+00> : vector<8x128xf32>
    %5 = tpu.matmul %3, %4, %cst_4 {dimension_numbers = #tpu.dot_dimension_numbers<[1], [1], [0], [0], [0, 0, 1, 0], [], []>} : vector<8x128xbf16>, vector<128x128xbf16>, vector<8x128xf32> -> vector<8x128xf32>
    %c0_5 = arith.constant 0 : index
    %c0_6 = arith.constant 0 : index
    %6 = vector.load %arg4[%c0_5, %c0_6] : memref<8x1xi32, #tpu.memory_space<vmem>>, vector<8x1xi32>
    %c128_i32 = arith.constant 128 : i32
    %7 = arith.muli %arg1, %c128_i32 : i32
    %8 = tpu.iota {dimensions = array<i32: 1>} : vector<8x128xi32>
    %9 = vector.broadcast %7 : i32 to vector<8x128xi32>
    %10 = arith.addi %9, %8 : vector<8x128xi32>
    %11 = vector.broadcast %6 : vector<8x1xi32> to vector<8x128xi32>
    %12 = arith.cmpi eq, %10, %11 : vector<8x128xi32>
    %c0_7 = arith.constant 0 : index
    %c0_8 = arith.constant 0 : index
    %13 = vector.load %arg9[%c0_7, %c0_8] : memref<8x1xf32, #tpu.memory_space<vmem>>, vector<8x1xf32>
    %cst_9 = arith.constant 0.000000e+00 : f32
    %14 = vector.broadcast %cst_9 : f32 to vector<8x128xf32>
    %15 = arith.select %12, %5, %14 : vector<8x128xi1>, vector<8x128xf32>
    %cst_10 = arith.constant dense<0.000000e+00> : vector<8xf32>
    %16 = vector.multi_reduction <add>, %15, %cst_10 [1] : vector<8x128xf32> to vector<8xf32>
    %17 = vector.shape_cast %16 : vector<8xf32> to vector<8x1xf32>
    %18 = arith.addf %13, %17 : vector<8x1xf32>
    %c0_11 = arith.constant 0 : index
    %c0_12 = arith.constant 0 : index
    %19 = vector.load %arg9[%c0_11, %c0_12] : memref<8x1xf32, #tpu.memory_space<vmem>>, vector<8x1xf32>
    tpu.vector_store %arg9[%c0_11, %c0_12], %18 {strides = array<i32>} : memref<8x1xf32, #tpu.memory_space<vmem>>, vector<8x1xf32>,
    %c10_i32 = arith.constant 10 : i32
    %20 = vector.broadcast %c10_i32 : i32 to vector<8x128xi32>
    %21 = arith.cmpi sge, %10, %20 : vector<8x128xi32>
    %22 = arith.ori %12, %21 : vector<8x128xi1>
    %cst_13 = arith.constant -1.000000e+30 : f32
    %23 = vector.broadcast %cst_13 : f32 to vector<8x128xf32>
    %24 = arith.select %22, %23, %5 : vector<8x128xi1>, vector<8x128xf32>
    %c0_14 = arith.constant 0 : index
    %c0_15 = arith.constant 0 : index
    %25 = vector.load %arg7[%c0_14, %c0_15] : memref<8x1xf32, #tpu.memory_space<vmem>>, vector<8x1xf32>
    %cst_16 = arith.constant dense<0xFF800000> : vector<8xf32>
    %26 = vector.multi_reduction <maximumf>, %24, %cst_16 [1] : vector<8x128xf32> to vector<8xf32>
    %27 = vector.shape_cast %26 : vector<8xf32> to vector<8x1xf32>
    %28 = arith.maximumf %25, %27 : vector<8x1xf32>
    %c0_17 = arith.constant 0 : index
    %c0_18 = arith.constant 0 : index
    %29 = vector.load %arg8[%c0_17, %c0_18] : memref<8x1xf32, #tpu.memory_space<vmem>>, vector<8x1xf32>
    %30 = arith.subf %25, %28 : vector<8x1xf32>
    %31 = math.exp %30 : vector<8x1xf32>
    %32 = arith.mulf %29, %31 : vector<8x1xf32>
    %33 = vector.broadcast %28 : vector<8x1xf32> to vector<8x128xf32>
    %34 = arith.subf %24, %33 : vector<8x128xf32>
    %35 = math.exp %34 : vector<8x128xf32>
    %cst_19 = arith.constant dense<0.000000e+00> : vector<8xf32>
    %36 = vector.multi_reduction <add>, %35, %cst_19 [1] : vector<8x128xf32> to vector<8xf32>
    %37 = vector.shape_cast %36 : vector<8xf32> to vector<8x1xf32>
    %38 = arith.addf %32, %37 : vector<8x1xf32>
    %c0_20 = arith.constant 0 : index
    %c0_21 = arith.constant 0 : index
    %39 = vector.load %arg8[%c0_20, %c0_21] : memref<8x1xf32, #tpu.memory_space<vmem>>, vector<8x1xf32>
    tpu.vector_store %arg8[%c0_20, %c0_21], %38 {strides = array<i32>} : memref<8x1xf32, #tpu.memory_space<vmem>>, vector<8x1xf32>,
    %c0_22 = arith.constant 0 : index
    %c0_23 = arith.constant 0 : index
    %40 = vector.load %arg7[%c0_22, %c0_23] : memref<8x1xf32, #tpu.memory_space<vmem>>, vector<8x1xf32>
    tpu.vector_store %arg7[%c0_22, %c0_23], %28 {strides = array<i32>} : memref<8x1xf32, #tpu.memory_space<vmem>>, vector<8x1xf32>,
    %c0_i32_24 = arith.constant 0 : i32
    %41 = arith.cmpi eq, %arg1, %c0_i32_24 : i32
    %42 = arith.extui %41 : i1 to i32
    %cst_25 = arith.constant 6.400000e+01 : f32
    %c0_i32_26 = arith.constant 0 : i32
    %43 = arith.cmpi ne, %42, %c0_i32_26 : i32
    scf.if %43 {
      %c0_27 = arith.constant 0 : index
      %c0_28 = arith.constant 0 : index
      %44 = vector.load %arg9[%c0_27, %c0_28] : memref<8x1xf32, #tpu.memory_space<vmem>>, vector<8x1xf32>
      %cst_29 = arith.constant 1.562500e-02 : f32
      %45 = vector.broadcast %cst_29 : f32 to vector<8x1xf32>
      %46 = arith.mulf %44, %45 : vector<8x1xf32>
      %cst_30 = arith.constant -0.99999988 : f32
      %cst_31 = arith.constant 0.99999988 : f32
      %47 = vector.broadcast %cst_30 : f32 to vector<8x1xf32>
      %48 = arith.maximumf %47, %46 : vector<8x1xf32>
      %49 = vector.broadcast %cst_31 : f32 to vector<8x1xf32>
      %50 = arith.minimumf %49, %48 : vector<8x1xf32>
      %cst_32 = arith.constant 0.87758255 : f32
      %51 = vector.broadcast %cst_32 : f32 to vector<8x1xf32>
      %52 = arith.mulf %50, %51 : vector<8x1xf32>
      %53 = arith.mulf %50, %50 : vector<8x1xf32>
      %cst_33 = arith.constant 1.000000e+00 : f32
      %54 = vector.broadcast %cst_33 : f32 to vector<8x1xf32>
      %55 = arith.subf %54, %53 : vector<8x1xf32>
      %cst_34 = arith.constant 0.000000e+00 : f32
      %56 = vector.broadcast %cst_34 : f32 to vector<8x1xf32>
      %57 = arith.maximumf %55, %56 : vector<8x1xf32>
      %58 = math.sqrt %57 : vector<8x1xf32>
      %cst_35 = arith.constant 0.47942555 : f32
      %59 = vector.broadcast %cst_35 : f32 to vector<8x1xf32>
      %60 = arith.mulf %58, %59 : vector<8x1xf32>
      %61 = arith.subf %52, %60 : vector<8x1xf32>
      %62 = vector.broadcast %cst_25 : f32 to vector<8x1xf32>
      %63 = arith.mulf %62, %61 : vector<8x1xf32>
      %c0_36 = arith.constant 0 : index
      %c0_37 = arith.constant 0 : index
      %64 = vector.load %arg7[%c0_36, %c0_37] : memref<8x1xf32, #tpu.memory_space<vmem>>, vector<8x1xf32>
      %65 = arith.maximumf %64, %63 : vector<8x1xf32>
      %c0_38 = arith.constant 0 : index
      %c0_39 = arith.constant 0 : index
      %66 = vector.load %arg8[%c0_38, %c0_39] : memref<8x1xf32, #tpu.memory_space<vmem>>, vector<8x1xf32>
      %c0_40 = arith.constant 0 : index
      %c0_41 = arith.constant 0 : index
      %67 = vector.load %arg7[%c0_40, %c0_41] : memref<8x1xf32, #tpu.memory_space<vmem>>, vector<8x1xf32>
      %68 = arith.subf %67, %65 : vector<8x1xf32>
      %69 = math.exp %68 : vector<8x1xf32>
      %70 = arith.mulf %66, %69 : vector<8x1xf32>
      %71 = arith.subf %63, %65 : vector<8x1xf32>
      %72 = math.exp %71 : vector<8x1xf32>
      %73 = arith.addf %70, %72 : vector<8x1xf32>
      %74 = math.log %73 : vector<8x1xf32>
      %75 = arith.addf %65, %74 : vector<8x1xf32>
      %76 = arith.subf %63, %75 : vector<8x1xf32>
      %77 = vector.shape_cast %76 : vector<8x1xf32> to vector<1x8x1xf32>
      %cst_42 = arith.constant dense<0.000000e+00> : vector<1xf32>
      %78 = vector.multi_reduction <add>, %77, %cst_42 [1, 2] : vector<1x8x1xf32> to vector<1xf32>
      %79 = vector.shape_cast %78 : vector<1xf32> to vector<1x1x1xf32>
      %80 = vector.extract %79[0, 0, 0] : f32 from vector<1x1x1xf32>
      %81 = vector.broadcast %80 : f32 to vector<1x1xf32>
      %82 = vector.shape_cast %81 : vector<1x1xf32> to vector<1x1xf32>
      %83 = vector.broadcast %82 : vector<1x1xf32> to vector<8x128xf32>
      %c0_43 = arith.constant 0 : index
      %c0_44 = arith.constant 0 : index
      %84 = vector.load %arg5[%c0_43, %c0_44] : memref<8x128xf32, #tpu.memory_space<vmem>>, vector<8x128xf32>
      tpu.vector_store %arg5[%c0_43, %c0_44], %83 {strides = array<i32>} : memref<8x128xf32, #tpu.memory_space<vmem>>, vector<8x128xf32>,
    } else {
    }
    return
  }
  func.func @transform_0(%arg0: i32, %arg1: i32) -> (i32, i32) {
    %c0_i32 = arith.constant 0 : i32
    %c0_i32_0 = arith.constant 0 : i32
    return %arg0, %c0_i32 : i32, i32
  }
  func.func @transform_1(%arg0: i32, %arg1: i32) -> (i32, i32) {
    %c0_i32 = arith.constant 0 : i32
    %c0_i32_0 = arith.constant 0 : i32
    return %arg1, %c0_i32 : i32, i32
  }
  func.func @transform_2(%arg0: i32, %arg1: i32) -> (i32, i32) {
    %c0_i32 = arith.constant 0 : i32
    %c0_i32_0 = arith.constant 0 : i32
    return %arg0, %c0_i32 : i32, i32
  }
  func.func @transform_3(%arg0: i32, %arg1: i32) -> (i32, i32) {
    %c0_i32 = arith.constant 0 : i32
    %c0_i32_0 = arith.constant 0 : i32
    return %arg0, %c0_i32 : i32, i32
  }
}

</mosaic_0001>

<llo_original>
// kernel: tpu_custom_call.1
$region0: #{tpu_custom_call.1}
  #allocation0 [shape = 'u32[]', space=smem, size = 0x4, offset = 0x4, fixed_abs, tag = 'smem constant byte address 0x4 - core index']
  #allocation1 [shape = 'u32[144,128]{1,0:T(1,128)}', space=vmem, size = 0x12000, scoped, tag = 'internal scratch']
  #allocation2 [shape = 'bf16[8,128]{1,0:T(8,128)(2,1)}', space=vmem, size = 0x800, scoped, tag = 'scratch operand']
  #allocation3 [shape = 'f32[8,1]{1,0:T(8,128)}', space=vmem, size = 0x1000, scoped, tag = 'scratch operand']
  #allocation4 [shape = 'f32[8,1]{1,0:T(8,128)}', space=vmem, size = 0x1000, scoped, tag = 'scratch operand']
  #allocation5 [shape = 'f32[8,1]{1,0:T(8,128)}', space=vmem, size = 0x1000, scoped, tag = 'scratch operand']
  %s0 = inlined_call_operand.vmem [shape: f32[8,128], index: 0, kind: input, shape index: {}]
  %s1 = inlined_call_operand.hbm [shape: bf16[128,128], index: 1, kind: input, shape index: {}]
  %s2 = inlined_call_operand.vmem [shape: s32[8,1], index: 2, kind: input, shape index: {}]
  %s3 = inlined_call_operand.hbm [shape: f32[8,128], index: 3, kind: output, shape index: {}]
  %s4 = sld [smem:[#allocation0]]
  $region34: #{tpu_custom_call.1} parent=0
    _
  %s6 = ssub.s32 1, %s4
  %s7 = scalar_select 0, %s6, %s4
  $region1: #{tpu_custom_call.1} parent=0
    #allocation6 [shape = 'u8[32768]{0}', space=vmem, size = 0x8000, scoped, tag = 'input window, operand 1, single buffered']
    #allocation7 [shape = 's32[1]{0}', space=sflag, size = 0x4, scoped, tag = 'scoped memory for tpu_custom_call.1']
    #allocation8 [shape = 's32[1]{0}', space=sflag, size = 0x4, scoped, tag = 'scoped memory for tpu_custom_call.1']
    #allocation9 [shape = 'u8[4096]{0}', space=vmem, size = 0x1000, scoped, tag = 'output window, operand 0, single buffered']
    %8 = vsyncpa [#allocation7], 0
    %9 = vsyncpa [#allocation8], 0
    // Predicated region
    $region2: #{tpu_custom_call.1} parent=1 // pred_check
      _
    $region3: #{tpu_custom_call.1} parent=1 // pred_check_branch
      %11 = sbr.rel (0) target = $region5
    $region4: #{tpu_custom_call.1} parent=1 // pred_region
      _
    $region5: #{tpu_custom_call.1} parent=1 // pred_fallthru
      _
    // Predicated region
    $region6: #{tpu_custom_call.1} parent=1 // pred_check
      _
    $region7: #{tpu_custom_call.1} parent=1 // pred_check_branch
      %13 = sbr.rel (0) target = $region9
    $region8: #{tpu_custom_call.1} parent=1 // pred_region
      %s15 = ssub.s32 1024, 1024
      %16 = vsyncadd [#allocation7], %s15
      %s17 = sshll.u32 [#allocation6], 4
      %s18 = int_to_ptr.vmem [resolvable:$true] %s17
      %23 = dma.hbm_to_vmem [thread:$0]  %s1, 1024, %s18, [#allocation7], 64, 64, 4
    $region9: #{tpu_custom_call.1} parent=1 // pred_fallthru
      _
    // Predicated region
    $region10: #{tpu_custom_call.1} parent=1 // pred_check
      _
    $region11: #{tpu_custom_call.1} parent=1 // pred_check_branch
      %25 = sbr.rel (0) target = $region13
    $region12: #{tpu_custom_call.1} parent=1 // pred_region
      _
    $region13: #{tpu_custom_call.1} parent=1 // pred_fallthru
      _
    // Predicated region
    $region14: #{tpu_custom_call.1} parent=1 // pred_check
      _
    $region15: #{tpu_custom_call.1} parent=1 // pred_check_branch
      %27 = sbr.rel (0) target = $region17
    $region16: #{tpu_custom_call.1} parent=1 // pred_region
      %28 = dma.done [#allocation7], 1024
    $region17: #{tpu_custom_call.1} parent=1 // pred_fallthru
      _
    %p30 = scmp.eq.s32.totalorder 0, 0
    // Predicated region
    $region18: #{tpu_custom_call.1} parent=1 // pred_check
      %p31 = pneg %p30
    $region19: #{tpu_custom_call.1} parent=1 // pred_check_branch
      %33 = sbr.rel (%p31) target = $region21
    $region20: #{tpu_custom_call.1} parent=1 // pred_region
      %v34 = vld [vmem:[%s0] sm:$0xff]
      %v35 = vmul.f32 %v34, %v34
      %36 = vadd.xlane.f32.xlu0 %v35
      %v37 = vpop.xlane.xlu0 %36
      %v38 = vmax.f32 %v37, 1e-12
      %v39 = vrsqrt.pop %v38
      %v40 = vmul.f32 %v39, 64.0
      %v41 = vmul.f32 %v34, %v40
      %v42 = vpack.c.bf16 %v41, %v41
      %43 = vst [vmem:[#allocation2] sm:$0xf] %v42
      %vm44 = vcmask 7168
      %45 = vst.msk [vmem:[#allocation3] sm:$0xff] %vm44, -1e+30
      %46 = vst.msk [vmem:[#allocation4] sm:$0xff] %vm44, 0.0
      %47 = vst.msk [vmem:[#allocation5] sm:$0xff] %vm44, 0.0
    $region21: #{tpu_custom_call.1} parent=1 // pred_fallthru
      _
    %v48 = vld [vmem:[#allocation2] sm:$0xf]
    %v49 = vld [vmem:[#allocation6] sm:$0xf]
    %v50 = vld [vmem:[#allocation6 + $0x4] sm:$0xf]
    %v51 = vld [vmem:[#allocation6 + $0x8] sm:$0xf]
    %v52 = vld [vmem:[#allocation6 + $0xc] sm:$0xf]
    %v53 = vld [vmem:[#allocation6 + $0x10] sm:$0xf]
    %v54 = vld [vmem:[#allocation6 + $0x14] sm:$0xf]
    %v55 = vld [vmem:[#allocation6 + $0x18] sm:$0xf]
    %v56 = vld [vmem:[#allocation6 + $0x1c] sm:$0xf]
    %v57 = vld [vmem:[#allocation6 + $0x20] sm:$0xf]
    %v58 = vld [vmem:[#allocation6 + $0x24] sm:$0xf]
    %v59 = vld [vmem:[#allocation6 + $0x28] sm:$0xf]
    %v60 = vld [vmem:[#allocation6 + $0x2c] sm:$0xf]
    %v61 = vld [vmem:[#allocation6 + $0x30] sm:$0xf]
    %v62 = vld [vmem:[#allocation6 + $0x34] sm:$0xf]
    %v63 = vld [vmem:[#allocation6 + $0x38] sm:$0xf]
    %v64 = vld [vmem:[#allocation6 + $0x3c] sm:$0xf]
    %v81 = vunpack.c.l.b16 %v49
    %v82 = vunpack.c.l.b16 %v50
    %v83 = vunpack.c.l.b16 %v51
    %v84 = vunpack.c.l.b16 %v52
    %v85 = vunpack.c.l.b16 %v53
    %v86 = vunpack.c.l.b16 %v54
    %v87 = vunpack.c.l.b16 %v55
    %v88 = vunpack.c.l.b16 %v56
    %v89 = vunpack.c.l.b16 %v57
    %v90 = vunpack.c.l.b16 %v58
    %v91 = vunpack.c.l.b16 %v59
    %v92 = vunpack.c.l.b16 %v60
    %v93 = vunpack.c.l.b16 %v61
    %v94 = vunpack.c.l.b16 %v62
    %v95 = vunpack.c.l.b16 %v63
    %v96 = vunpack.c.l.b16 %v64
    %v97 = vpack.c.b16 %v82, %v81
    %v98 = vpack.c.b16 %v84, %v83
    %v99 = vpack.c.b16 %v86, %v85
    %v100 = vpack.c.b16 %v88, %v87
    %v101 = vpack.c.b16 %v90, %v89
    %v102 = vpack.c.b16 %v92, %v91
    %v103 = vpack.c.b16 %v94, %v93
    %v104 = vpack.c.b16 %v96, %v95
    %113 = vmatprep.subr.bf16.mxu0 0
    %114 = vmatpush1.bf16.xpose.msra.mxu0 %v97
    %115 = vmatprep.subr.bf16.mxu0 0
    %116 = vmatpush1.bf16.xpose.msra.mxu0 %v98
    %117 = vmatprep.subr.bf16.mxu0 0
    %118 = vmatpush1.bf16.xpose.msra.mxu0 %v99
    %119 = vmatprep.subr.bf16.mxu0 0
    %120 = vmatpush1.bf16.xpose.msra.mxu0 %v100
    %121 = vmatprep.subr.bf16.mxu0 0
    %122 = vmatpush1.bf16.xpose.msra.mxu0 %v101
    %123 = vmatprep.subr.bf16.mxu0 0
    %124 = vmatpush1.bf16.xpose.msra.mxu0 %v102
    %125 = vmatprep.subr.bf16.mxu0 0
    %126 = vmatpush1.bf16.xpose.msra.mxu0 %v103
    %127 = vmatprep.subr.bf16.mxu0 0
    %128 = vmatpush1.bf16.xpose.msra.mxu0 %v104
    %129 = vmatprep.subr.bf16.mxu0 0
    %130 = vmatpush1.bf16.xpose.msra.mxu0 0
    %131 = vmatprep.subr.bf16.mxu0 0
    %132 = vmatpush1.bf16.xpose.msra.mxu0 0
    %133 = vmatprep.subr.bf16.mxu0 0
    %134 = vmatpush1.bf16.xpose.msra.mxu0 0
    %135 = vmatprep.subr.bf16.mxu0 0
    %136 = vmatpush1.bf16.xpose.msra.mxu0 0
    %137 = vmatprep.subr.bf16.mxu0 0
    %138 = vmatpush1.bf16.xpose.msra.mxu0 0
    %139 = vmatprep.subr.bf16.mxu0 0
    %140 = vmatpush1.bf16.xpose.msra.mxu0 0
    %141 = vmatprep.subr.bf16.mxu0 0
    %142 = vmatpush1.bf16.xpose.msra.mxu0 0
    %143 = vmatprep.subr.bf16.mxu0 0
    %144 = vmatpush1.bf16.xpose.msra.mxu0 0
    %145 = vmatprep.mubr.bf16.mxu0 0
    %146 = vmatmul.mubr.bf16.gmra.mrb[0].mxu0 %v48
    %v147 = vpop.f32.mrb[0].mxu0
    %v148 = vadd.f32 0.0, %v147
    %v149 = vpop.f32.mrb[0].mxu0
    %v150 = vpop.f32.mrb[0].mxu0
    %v151 = vpop.f32.mrb[0].mxu0
    %152 = vdwg.mxu0
    %v153 = vld [vmem:[%s2] sm:$0xff]
    %s154 = smul.u32 0, 128
    %v155 = vlaneseq
    %v156 = vand.u32 %v155, 127
    %v157 = vstv %s154
    %v158 = vadd.s32 %v157, %v156
    %159 = vset.pattern.permute.xlu0 0
    %160 = vperm.xlu0 %159, %v153
    %v161 = vpop.permute.xlu0 %160
    %vm162 = vcmp.eq.s32.totalorder %v158, %v161
    %v163 = vld [vmem:[#allocation5] sm:$0xff]
    %v164 = vsel %vm162, %v148, 0.0
    %165 = vadd.xlane.f32.xlu0 %v164
    %v166 = vpop.xlane.xlu0 %165
    %v167 = vadd.f32 %v163, %v166
    %vm168 = vcmask 7168
    %169 = vst.msk [vmem:[#allocation5] sm:$0xff] %vm168, %v167
    %vm170 = vcmp.ge.s32.totalorder %v158, 10
    %vm171 = vmor %vm162, %vm170
    %v172 = vsel %vm171, -1e+30, %v148
    %v173 = vld [vmem:[#allocation3] sm:$0xff]
    %174 = vmax.xlane.f32.xlu0 %v172
    %v175 = vpop.xlane.xlu0 %174
    %v176 = vmax.f32 %v173, %v175
    %v177 = vld [vmem:[#allocation4] sm:$0xff]
    %v178 = vsub.f32 %v173, %v176
    %v179 = vmul.f32 %v178, 1.442695
    %v180 = vpow.pop %v179
    %v181 = vmul.f32 %v177, %v180
    %183 = vset.pattern.permute.xlu0 0
    %184 = vperm.xlu0 %183, %v176
    %v185 = vpop.permute.xlu0 %184
    %v187 = vsub.f32 %v172, %v185
    %v188 = vmul.f32 %v187, 1.442695
    %v189 = vpow.pop %v188
    %190 = vadd.xlane.f32.xlu0 %v189
    %v191 = vpop.xlane.xlu0 %190
    %v192 = vadd.f32 %v181, %v191
    %193 = vst.msk [vmem:[#allocation4] sm:$0xff] %vm168, %v192
    %194 = vst.msk [vmem:[#allocation3] sm:$0xff] %vm168, %v176
    // Predicated region
    $region22: #{tpu_custom_call.1} parent=1 // pred_check
      %p195 = pneg %p30
    $region23: #{tpu_custom_call.1} parent=1 // pred_check_branch
      %197 = sbr.rel (%p195) target = $region25
    $region24: #{tpu_custom_call.1} parent=1 // pred_region
      %v198 = vld [vmem:[#allocation5] sm:$0xff]
      %v199 = vmul.f32 %v198, 0.015625
      %v200 = vmax.f32 %v199, -0.9999999
      %v201 = vmin.f32 %v200, 0.9999999
      %v202 = vmul.f32 %v201, 0.87758255
      %v203 = vmul.f32 %v201, %v201
      %v204 = vsub.f32 1.0, %v203
      %v205 = vmax.f32 %v204, 0.0
      %v206 = vrsqrt.pop %v205
      %v207 = vmul.f32 %v205, %v206
      %vm208 = vcmp.eq.f32.partialorder %v205, inf
      %v209 = vsel %vm208, %v205, %v207
      %vm210 = vcmp.eq.f32.partialorder %v205, 0.0
      %v211 = vand.u32 %v205, 2147483648
      %v212 = vsel %vm210, %v211, %v209
      %v213 = vmul.f32 %v212, 0.47942555
      %v214 = vsub.f32 %v202, %v213
      %v215 = vmul.f32 %v214, 64.0
      %v216 = vld [vmem:[#allocation3] sm:$0xff]
      %v217 = vmax.f32 %v216, %v215
      %v218 = vld [vmem:[#allocation4] sm:$0xff]
      %v219 = vsub.f32 %v216, %v217
      %v220 = vmul.f32 %v219, 1.442695
      %v221 = vpow.pop %v220
      %v222 = vmul.f32 %v218, %v221
      %v223 = vsub.f32 %v215, %v217
      %v224 = vmul.f32 %v223, 1.442695
      %v225 = vpow.pop %v224
      %v226 = vadd.f32 %v222, %v225
      %v227 = vlog2.pop %v226
      %v228 = vmul.f32 %v227, 0.6931472
      %v229 = vadd.f32 %v217, %v228
      %v230 = vsub.f32 %v215, %v229
      %v231 = vsel %vm168, %v230, 0.0
      %232 = vadd.xlane.f32.xlu0 %v231
      %v233 = vpop.xlane.xlu0 %232
      %v234 = vrot.slane %v233, 4
      %v235 = vadd.f32 %v233, %v234
      %v236 = vrot.slane %v235, 2
      %v237 = vadd.f32 %v235, %v236
      %v238 = vrot.slane %v237, 1
      %v239 = vadd.f32 %v237, %v238
      %s240 = vtos %v239
      %v241 = vstv %s240
      %242 = vst [vmem:[#allocation9] sm:$0xff] %v241
    $region25: #{tpu_custom_call.1} parent=1 // pred_fallthru
      _
    // Predicated region
    $region26: #{tpu_custom_call.1} parent=1 // pred_check
      _
    $region27: #{tpu_custom_call.1} parent=1 // pred_check_branch
      %244 = sbr.rel (0) target = $region29
    $region28: #{tpu_custom_call.1} parent=1 // pred_region
      %s246 = ssub.s32 128, 128
      %247 = vsyncadd [#allocation8], %s246
      %s249 = sshll.u32 [#allocation9], 4
      %s250 = int_to_ptr.vmem [resolvable:$true] %s249
      %252 = dma.vmem_to_hbm [thread:$0]  %s250, 128, %s3, [#allocation8]
    $region29: #{tpu_custom_call.1} parent=1 // pred_fallthru
      _
    // Predicated region
    $region30: #{tpu_custom_call.1} parent=1 // pred_check
      _
    $region31: #{tpu_custom_call.1} parent=1 // pred_check_branch
      %254 = sbr.rel (0) target = $region33
    $region32: #{tpu_custom_call.1} parent=1 // pred_region
      %255 = dma.done [#allocation8], 128
    $region33: #{tpu_custom_call.1} parent=1 // pred_fallthru
      _
    %256 = vsyncpa [#allocation7], 1
    %257 = vsyncpa [#allocation8], 1

</llo_original>
